<compile_context>
chip_gen: v7x
topology: tpu7x:2x2x1
jax: 0.10.0
libtpu: 0.0.40
codegen_flags: <defaults>
</compile_context>

<pallas_src>
import functools

import jax
import jax.numpy as jnp
from jax.experimental import pallas as pl
from jax.experimental.pallas import tpu as pltpu

LANES = 128
MAX_BLOCK_ROWS = 4096   # 4096 x 128 x 4B = 2 MiB per f32 input block
ROW_ALIGN = 32          # sublane packing safe for f32/bf16/fp8
NUM_SPLITS = 2          # leading "parallel" grid axis (megacore split)
SENTINEL_LOGIT = -1e4   # sigmoid/softplus underflow to exactly 0 in f32


def _round_up(a, b):
    return ((a + b - 1) // b) * b


def _dice_bce_kernel(x_ref, t_ref, out_ref, *, block_rows):
    j = pl.program_id(1)

    @pl.when(j == 0)
    def _init():
        out_ref[...] = jnp.zeros_like(out_ref)

    x = x_ref[...].astype(jnp.float32)
    t = t_ref[...].astype(jnp.float32)

    # One EUP exp per element, shared between sigmoid and BCE.
    e = jnp.exp(-jnp.abs(x))
    p = jnp.where(x >= 0.0, jnp.float32(1.0), e) / (1.0 + e)   # exact sigmoid
    # BCE from logits: softplus(x) - t*x == -(t*log(p) + (1-t)*log(1-p))
    bce = jnp.maximum(x, 0.0) - t * x + jnp.log1p(e)

    # Reduce each (block_rows, 128) quantity to an (8, 128) vreg-shaped partial
    # with cross-vreg (VPU-only) adds; full cross-lane reduction is deferred to
    # the tiny JAX epilogue.
    r3 = (block_rows // 8, 8, LANES)
    out_ref[0] += jnp.sum((p * t).reshape(r3), axis=0)    # intersection
    out_ref[1] += jnp.sum(p.reshape(r3), axis=0)          # sum(sigmoid(x))
    out_ref[2] += jnp.sum(t.reshape(r3), axis=0)          # sum(targets)
    out_ref[3] += jnp.sum(bce.reshape(r3), axis=0)        # sum(BCE terms)


def dice_bce_loss(inputs, targets, smooth=1.0):
    """Pallas implementation of DiceBCELoss.forward (returns a scalar f32)."""
    x = jnp.ravel(inputs)          # keep original dtype; cast inside kernel
    t = jnp.ravel(targets)
    n = x.shape[0]

    rows = (n + LANES - 1) // LANES
    block_rows = min(MAX_BLOCK_ROWS,
                     max(ROW_ALIGN,
                         _round_up((rows + NUM_SPLITS - 1) // NUM_SPLITS,
                                   ROW_ALIGN)))
    padded_rows = _round_up(rows, NUM_SPLITS * block_rows)
    blocks_per_split = padded_rows // (NUM_SPLITS * block_rows)
    padded_n = padded_rows * LANES

    if padded_n != n:
        # Sentinel padding: padded logits -> sigmoid == 0, softplus == 0 and
        # padded targets == 0, so they contribute exactly 0 to all four sums.
        # No in-kernel masking required.
        x = jnp.pad(x, (0, padded_n - n), constant_values=SENTINEL_LOGIT)
        t = jnp.pad(t, (0, padded_n - n), constant_values=0)
    x2 = x.reshape(padded_rows, LANES)
    t2 = t.reshape(padded_rows, LANES)

    kernel = functools.partial(_dice_bce_kernel, block_rows=int(block_rows))

    in_map = lambda c, j: (c * blocks_per_split + j, 0)
    bytes_accessed = int(padded_n * (x2.dtype.itemsize + t2.dtype.itemsize)
                         + NUM_SPLITS * 4 * 8 * LANES * 4)
    cost = pl.CostEstimate(flops=int(12 * padded_n),
                           transcendentals=int(2 * padded_n),
                           bytes_accessed=bytes_accessed)

    partials = pl.pallas_call(
        kernel,
        out_shape=jax.ShapeDtypeStruct((NUM_SPLITS, 4, 8, LANES), jnp.float32),
        grid_spec=pltpu.PrefetchScalarGridSpec(
            num_scalar_prefetch=0,
            grid=(NUM_SPLITS, blocks_per_split),
            in_specs=[
                pl.BlockSpec((block_rows, LANES), in_map),
                pl.BlockSpec((block_rows, LANES), in_map),
            ],
            out_specs=pl.BlockSpec((None, 4, 8, LANES),
                                   lambda c, j: (c, 0, 0, 0)),
        ),
        compiler_params=pltpu.CompilerParams(
            dimension_semantics=("parallel", "arbitrary"),
            vmem_limit_bytes=32 * 1024 * 1024,
        ),
        cost_estimate=cost,
    )(x2, t2)

    # Tiny epilogue in plain JAX: (2, 4, 8, 128) -> 4 scalars.
    sums = jnp.sum(partials, axis=(0, 2, 3))
    inter, psum, tsum, bce_sum = sums[0], sums[1], sums[2], sums[3]
    smooth = jnp.float32(smooth)
    dice_loss = 1.0 - (2.0 * inter + smooth) / (psum + tsum + smooth)
    bce_mean = bce_sum / jnp.float32(n)
    return bce_mean + dice_loss


def _reference(inputs, targets, smooth=1.0):
    # Mirrors the PyTorch module: sigmoid -> dice + mean BCE on probabilities.
    p = jax.nn.sigmoid(inputs.astype(jnp.float32)).ravel()
    t = targets.ravel().astype(jnp.float32)
    inter = jnp.sum(p * t)
    dice = 1.0 - (2.0 * inter + smooth) / (jnp.sum(p) + jnp.sum(t) + smooth)
    bce = jnp.mean(-(t * jnp.log(p) + (1.0 - t) * jnp.log(1.0 - p)))
    return bce + dice


if __name__ == "__main__":
    key = jax.random.PRNGKey(0)
    k1, k2, k3, k4 = jax.random.split(key, 4)

    # NCHW logits + binary targets, matching the PyTorch module's usage.
    B, C, H, W = 2, 4, 16, 16
    logits = jax.random.normal(k1, (B, C, H, W), dtype=jnp.float32)
    targets = (jax.random.uniform(k2, (B, C, H, W)) > 0.5).astype(jnp.float32)

    loss = jax.block_until_ready(dice_bce_loss(logits, targets))
    ref = _reference(logits, targets)
    assert jnp.allclose(loss, ref, rtol=1e-5, atol=1e-5), (loss, ref)

    # Ragged (non-tile-multiple) shape exercises the sentinel-pad path.
    shape2 = (2, 3, 15, 17)
    logits2 = jax.random.normal(k3, shape2, dtype=jnp.float32)
    targets2 = (jax.random.uniform(k4, shape2) > 0.5).astype(jnp.float32)
    loss2 = jax.block_until_ready(dice_bce_loss(logits2, targets2))
    ref2 = _reference(logits2, targets2)
    assert jnp.allclose(loss2, ref2, rtol=1e-5, atol=1e-5), (loss2, ref2)

    # bf16 logits / bf16 {0,1} targets: half the streamed HBM bytes.
    logits3 = jax.random.normal(k3, (B, C, H, W), dtype=jnp.bfloat16)
    targets3 = (jax.random.uniform(k4, (B, C, H, W)) > 0.5).astype(jnp.bfloat16)
    loss3 = jax.block_until_ready(dice_bce_loss(logits3, targets3))
    ref3 = _reference(logits3.astype(jnp.float32), targets3.astype(jnp.float32))
    assert jnp.allclose(loss3, ref3, rtol=3e-3, atol=3e-3), (loss3, ref3)

    print("KERNEL_OK")
</pallas_src>

<mosaic_0001>
module attributes {stable_mosaic.version = 11 : i64} {
  func.func @_dice_bce_kernel(%arg0: i32, %arg1: i32, %arg2: memref<32x128xf32, #tpu.memory_space<vmem>>, %arg3: memref<32x128xf32, #tpu.memory_space<vmem>>, %arg4: memref<1x4x8x128xf32, #tpu.memory_space<vmem>>) attributes {dimension_semantics = [#tpu.dimension_semantics<parallel>, #tpu.dimension_semantics<arbitrary>], iteration_bounds = array<i64: 2, 1>, scalar_prefetch = 0 : i64, scratch_operands = 0 : i64, tpu.core_type = #tpu.core_type<tc>, window_params = [{transform_indices = @transform_0, window_bounds = array<i64: 32, 128>}, {transform_indices = @transform_1, window_bounds = array<i64: 32, 128>}, {transform_indices = @transform_2, window_bounds = array<i64: 1, 4, 8, 128>}]} {
    %c0_i32 = arith.constant 0 : i32
    %0 = arith.cmpi eq, %arg1, %c0_i32 : i32
    %1 = arith.extui %0 : i1 to i32
    %c0_i32_0 = arith.constant 0 : i32
    %2 = arith.cmpi ne, %1, %c0_i32_0 : i32
    scf.if %2 {
      %cst_41 = arith.constant 0.000000e+00 : f32
      %55 = vector.broadcast %cst_41 : f32 to vector<4x8x128xf32>
      %c0_42 = arith.constant 0 : index
      %c0_43 = arith.constant 0 : index
      %c0_44 = arith.constant 0 : index
      %c0_45 = arith.constant 0 : index
      %56 = vector.load %arg4[%c0_42, %c0_43, %c0_44, %c0_45] : memref<1x4x8x128xf32, #tpu.memory_space<vmem>>, vector<1x4x8x128xf32>
      %57 = vector.shape_cast %56 : vector<1x4x8x128xf32> to vector<4x8x128xf32>
      %58 = vector.shape_cast %55 : vector<4x8x128xf32> to vector<1x4x8x128xf32>
      tpu.vector_store %arg4[%c0_42, %c0_43, %c0_44, %c0_45], %58 {strides = array<i32>} : memref<1x4x8x128xf32, #tpu.memory_space<vmem>>, vector<1x4x8x128xf32>,
    } else {
    }
    %c0 = arith.constant 0 : index
    %c0_1 = arith.constant 0 : index
    %3 = vector.load %arg2[%c0, %c0_1] : memref<32x128xf32, #tpu.memory_space<vmem>>, vector<32x128xf32>
    %c0_2 = arith.constant 0 : index
    %c0_3 = arith.constant 0 : index
    %4 = vector.load %arg3[%c0_2, %c0_3] : memref<32x128xf32, #tpu.memory_space<vmem>>, vector<32x128xf32>
    %5 = math.absf %3 : vector<32x128xf32>
    %cst = arith.constant 0.000000e+00 : f32
    %6 = vector.broadcast %cst : f32 to vector<32x128xf32>
    %7 = arith.subf %6, %5 : vector<32x128xf32>
    %8 = math.exp %7 : vector<32x128xf32>
    %cst_4 = arith.constant 0.000000e+00 : f32
    %9 = vector.broadcast %cst_4 : f32 to vector<32x128xf32>
    %10 = arith.cmpf oge, %3, %9 : vector<32x128xf32>
    %cst_5 = arith.constant 1.000000e+00 : f32
    %11 = vector.broadcast %cst_5 : f32 to vector<32x128xf32>
    %12 = arith.select %10, %11, %8 : vector<32x128xi1>, vector<32x128xf32>
    %cst_6 = arith.constant 1.000000e+00 : f32
    %13 = vector.broadcast %cst_6 : f32 to vector<32x128xf32>
    %14 = arith.addf %13, %8 : vector<32x128xf32>
    %15 = arith.divf %12, %14 : vector<32x128xf32>
    %cst_7 = arith.constant 0.000000e+00 : f32
    %16 = vector.broadcast %cst_7 : f32 to vector<32x128xf32>
    %17 = arith.maximumf %3, %16 : vector<32x128xf32>
    %18 = arith.mulf %4, %3 : vector<32x128xf32>
    %19 = arith.subf %17, %18 : vector<32x128xf32>
    %20 = math.log1p %8 : vector<32x128xf32>
    %21 = arith.addf %19, %20 : vector<32x128xf32>
    %c0_8 = arith.constant 0 : index
    %c0_9 = arith.constant 0 : index
    %c0_10 = arith.constant 0 : index
    %c0_11 = arith.constant 0 : index
    %22 = vector.load %arg4[%c0_8, %c0_9, %c0_10, %c0_11] : memref<1x4x8x128xf32, #tpu.memory_space<vmem>>, vector<1x1x8x128xf32>
    %23 = vector.shape_cast %22 : vector<1x1x8x128xf32> to vector<8x128xf32>
    %24 = arith.mulf %15, %4 : vector<32x128xf32>
    %25 = vector.shape_cast %24 : vector<32x128xf32> to vector<4x8x128xf32>
    %cst_12 = arith.constant dense<0.000000e+00> : vector<8x128xf32>
    %26 = vector.multi_reduction <add>, %25, %cst_12 [0] : vector<4x8x128xf32> to vector<8x128xf32>
    %27 = arith.addf %23, %26 : vector<8x128xf32>
    %c0_13 = arith.constant 0 : index
    %c0_14 = arith.constant 0 : index
    %c0_15 = arith.constant 0 : index
    %c0_16 = arith.constant 0 : index
    %28 = vector.load %arg4[%c0_13, %c0_14, %c0_15, %c0_16] : memref<1x4x8x128xf32, #tpu.memory_space<vmem>>, vector<1x1x8x128xf32>
    %29 = vector.shape_cast %28 : vector<1x1x8x128xf32> to vector<8x128xf32>
    %30 = vector.shape_cast %27 : vector<8x128xf32> to vector<1x1x8x128xf32>
    tpu.vector_store %arg4[%c0_13, %c0_14, %c0_15, %c0_16], %30 {strides = array<i32>} : memref<1x4x8x128xf32, #tpu.memory_space<vmem>>, vector<1x1x8x128xf32>,
    %c0_17 = arith.constant 0 : index
    %c1 = arith.constant 1 : index
    %c0_18 = arith.constant 0 : index
    %c0_19 = arith.constant 0 : index
    %31 = vector.load %arg4[%c0_17, %c1, %c0_18, %c0_19] : memref<1x4x8x128xf32, #tpu.memory_space<vmem>>, vector<1x1x8x128xf32>
    %32 = vector.shape_cast %31 : vector<1x1x8x128xf32> to vector<8x128xf32>
    %33 = vector.shape_cast %15 : vector<32x128xf32> to vector<4x8x128xf32>
    %cst_20 = arith.constant dense<0.000000e+00> : vector<8x128xf32>
    %34 = vector.multi_reduction <add>, %33, %cst_20 [0] : vector<4x8x128xf32> to vector<8x128xf32>
    %35 = arith.addf %32, %34 : vector<8x128xf32>
    %c0_21 = arith.constant 0 : index
    %c1_22 = arith.constant 1 : index
    %c0_23 = arith.constant 0 : index
    %c0_24 = arith.constant 0 : index
    %36 = vector.load %arg4[%c0_21, %c1_22, %c0_23, %c0_24] : memref<1x4x8x128xf32, #tpu.memory_space<vmem>>, vector<1x1x8x128xf32>
    %37 = vector.shape_cast %36 : vector<1x1x8x128xf32> to vector<8x128xf32>
    %38 = vector.shape_cast %35 : vector<8x128xf32> to vector<1x1x8x128xf32>
    tpu.vector_store %arg4[%c0_21, %c1_22, %c0_23, %c0_24], %38 {strides = array<i32>} : memref<1x4x8x128xf32, #tpu.memory_space<vmem>>, vector<1x1x8x128xf32>,
    %c0_25 = arith.constant 0 : index
    %c2 = arith.constant 2 : index
    %c0_26 = arith.constant 0 : index
    %c0_27 = arith.constant 0 : index
    %39 = vector.load %arg4[%c0_25, %c2, %c0_26, %c0_27] : memref<1x4x8x128xf32, #tpu.memory_space<vmem>>, vector<1x1x8x128xf32>
    %40 = vector.shape_cast %39 : vector<1x1x8x128xf32> to vector<8x128xf32>
    %41 = vector.shape_cast %4 : vector<32x128xf32> to vector<4x8x128xf32>
    %cst_28 = arith.constant dense<0.000000e+00> : vector<8x128xf32>
    %42 = vector.multi_reduction <add>, %41, %cst_28 [0] : vector<4x8x128xf32> to vector<8x128xf32>
    %43 = arith.addf %40, %42 : vector<8x128xf32>
    %c0_29 = arith.constant 0 : index
    %c2_30 = arith.constant 2 : index
    %c0_31 = arith.constant 0 : index
    %c0_32 = arith.constant 0 : index
    %44 = vector.load %arg4[%c0_29, %c2_30, %c0_31, %c0_32] : memref<1x4x8x128xf32, #tpu.memory_space<vmem>>, vector<1x1x8x128xf32>
    %45 = vector.shape_cast %44 : vector<1x1x8x128xf32> to vector<8x128xf32>
    %46 = vector.shape_cast %43 : vector<8x128xf32> to vector<1x1x8x128xf32>
    tpu.vector_store %arg4[%c0_29, %c2_30, %c0_31, %c0_32], %46 {strides = array<i32>} : memref<1x4x8x128xf32, #tpu.memory_space<vmem>>, vector<1x1x8x128xf32>,
    %c0_33 = arith.constant 0 : index
    %c3 = arith.constant 3 : index
    %c0_34 = arith.constant 0 : index
    %c0_35 = arith.constant 0 : index
    %47 = vector.load %arg4[%c0_33, %c3, %c0_34, %c0_35] : memref<1x4x8x128xf32, #tpu.memory_space<vmem>>, vector<1x1x8x128xf32>
    %48 = vector.shape_cast %47 : vector<1x1x8x128xf32> to vector<8x128xf32>
    %49 = vector.shape_cast %21 : vector<32x128xf32> to vector<4x8x128xf32>
    %cst_36 = arith.constant dense<0.000000e+00> : vector<8x128xf32>
    %50 = vector.multi_reduction <add>, %49, %cst_36 [0] : vector<4x8x128xf32> to vector<8x128xf32>
    %51 = arith.addf %48, %50 : vector<8x128xf32>
    %c0_37 = arith.constant 0 : index
    %c3_38 = arith.constant 3 : index
    %c0_39 = arith.constant 0 : index
    %c0_40 = arith.constant 0 : index
    %52 = vector.load %arg4[%c0_37, %c3_38, %c0_39, %c0_40] : memref<1x4x8x128xf32, #tpu.memory_space<vmem>>, vector<1x1x8x128xf32>
    %53 = vector.shape_cast %52 : vector<1x1x8x128xf32> to vector<8x128xf32>
    %54 = vector.shape_cast %51 : vector<8x128xf32> to vector<1x1x8x128xf32>
    tpu.vector_store %arg4[%c0_37, %c3_38, %c0_39, %c0_40], %54 {strides = array<i32>} : memref<1x4x8x128xf32, #tpu.memory_space<vmem>>, vector<1x1x8x128xf32>,
    return
  }
  func.func @transform_0(%arg0: i32, %arg1: i32) -> (i32, i32) {
    %c1_i32 = arith.constant 1 : i32
    %0 = arith.muli %arg0, %c1_i32 : i32
    %1 = arith.addi %0, %arg1 : i32
    %c0_i32 = arith.constant 0 : i32
    %c0_i32_0 = arith.constant 0 : i32
    return %1, %c0_i32 : i32, i32
  }
  func.func @transform_1(%arg0: i32, %arg1: i32) -> (i32, i32) {
    %c1_i32 = arith.constant 1 : i32
    %0 = arith.muli %arg0, %c1_i32 : i32
    %1 = arith.addi %0, %arg1 : i32
    %c0_i32 = arith.constant 0 : i32
    %c0_i32_0 = arith.constant 0 : i32
    return %1, %c0_i32 : i32, i32
  }
  func.func @transform_2(%arg0: i32, %arg1: i32) -> (i32, i32, i32, i32) {
    %c0_i32 = arith.constant 0 : i32
    %c0_i32_0 = arith.constant 0 : i32
    %c0_i32_1 = arith.constant 0 : i32
    %c0_i32_2 = arith.constant 0 : i32
    return %arg0, %c0_i32, %c0_i32_0, %c0_i32_1 : i32, i32, i32, i32
  }
}

</mosaic_0001>

<llo_original>
// kernel: tpu_custom_call.1
$region0: #{tpu_custom_call.1}
  #allocation0 [shape = 'u32[]', space=smem, size = 0x4, offset = 0x4, fixed_abs, tag = 'smem constant byte address 0x4 - core index']
  #allocation1 [shape = 'u32[144,128]{1,0:T(1,128)}', space=vmem, size = 0x12000, scoped, tag = 'internal scratch']
  %s0 = inlined_call_operand.hbm [shape: f32[64,128], index: 0, kind: input, shape index: {}]
  %s1 = inlined_call_operand.hbm [shape: f32[64,128], index: 1, kind: input, shape index: {}]
  %s2 = inlined_call_operand.hbm [shape: f32[2,4,8,128], index: 2, kind: output, shape index: {}]
  %s3 = sld [smem:[#allocation0]]
  $region53: #{tpu_custom_call.1} parent=0
    _
  %s5 = ssub.s32 1, %s3
  %s6 = scalar_select 0, %s5, %s3
  $region1: #{tpu_custom_call.1} parent=0
    #allocation2 [shape = 'u8[32768]{0}', space=vmem, size = 0x8000, scoped, tag = 'input window, operand 0']
    #allocation3 [shape = 's32[2]{0}', space=sflag, size = 0x8, scoped, tag = 'scoped memory for tpu_custom_call.1']
    #allocation4 [shape = 's32[2]{0}', space=sflag, size = 0x8, scoped, tag = 'scoped memory for tpu_custom_call.1']
    #allocation5 [shape = 'u8[32768]{0}', space=vmem, size = 0x8000, scoped, tag = 'input window, operand 1']
    #allocation6 [shape = 's32[2]{0}', space=sflag, size = 0x8, scoped, tag = 'scoped memory for tpu_custom_call.1']
    #allocation7 [shape = 'u8[32768]{0}', space=vmem, size = 0x8000, scoped, tag = 'output window, operand 0']
    %7 = vsyncpa [#allocation3], 0
    %s8 = scalar_lea.sflag [#allocation3], 1
    %9 = vsyncpa %s8, 0
    %10 = vsyncpa [#allocation6], 0
    %s11 = scalar_lea.sflag [#allocation6], 1
    %12 = vsyncpa %s11, 0
    %13 = vsyncpa [#allocation4], 0
    %s14 = scalar_lea.sflag [#allocation4], 1
    %15 = vsyncpa %s14, 0
    loop: start=0, step=1, limit=4
    $region2: #{tpu_custom_call.1} parent=1 // loop_pre_header
      _
    $region3: #{tpu_custom_call.1} parent=1 // loop_header
      %s17 = sphi 0, %s21
      %p18 = scmp.ge.s32.totalorder %s17, 4
      %s24 = sphi 0, %s36
      %s25 = sphi 0, %s32
      %s26 = sphi 0, %s24
      %s27 = sphi 0, %s25
      %s28 = sphi 0, %s26
      %s29 = sphi 0, %s27
      %s41 = sphi 0, %s43
      %s44 = sphi 0, %s41
      %s45 = sphi 0, %s44
      %s61 = sphi 0, %s45
      %s69 = sphi 0, %s71
      %s72 = sphi 0, %s69
      %s73 = sphi 0, %s72
      %s89 = sphi 0, %s73
      %s95 = sphi 0, %s97
      %s98 = sphi 0, %s95
      %s99 = sphi 0, %s98
      %s115 = sphi 0, %s99
    $region4: #{tpu_custom_call.1} parent=1 // loop_header_branch
      %20 = sbr.rel (%p18) target = $region8
    $region5: #{tpu_custom_call.1} parent=1 // loop_body
      %s22 = ssub.s32 %s17, 1
      %s23 = ssub.s32 %s17, 2
      %s30 = sadd.s32 1, %s25
      %p31 = scmp.ge.s32.totalorder %s30, 1
      %s32 = scalar_select %p31, 0, %s30
      %s33 = sadd.s32 1, %s24
      %s34 = scalar_select %p31, %s33, %s24
      %p35 = scmp.ge.s32.totalorder %s34, 2
      %s36 = scalar_select %p35, 0, %s34
      %s37 = sadd.s32 %s24, %s25
      %s38 = sadd.s32 %s36, %s32
      %s39 = ssub.s32 %s37, %s38
      %p40 = scmp.eq.s32.totalorder %s39, 0
      %s42 = sadd.s32 %s41, 1
      %s43 = scalar_select %p40, %s41, %s42
      %p46 = pneg %p40
      %p47 = scmp.eq.s32.totalorder %s17, 1
      %p48 = por %p46, %p47
      %p49 = scmp.ne.s32.totalorder %s41, %s44
      %p50 = scmp.eq.s32.totalorder %s17, 0
      %p51 = por %p49, %p50
      %p52 = scmp.ne.s32.totalorder %s41, %s44
      %p53 = scmp.eq.s32.totalorder %s22, 1
      %p54 = por %p52, %p53
      %p55 = scmp.ne.s32.totalorder %s44, %s45
      %p56 = scmp.eq.s32.totalorder %s22, 0
      %p57 = por %p55, %p56
      %p58 = scmp.ne.s32.totalorder %s44, %s45
      %p59 = scmp.eq.s32.totalorder %s23, 1
      %p60 = por %p58, %p59
      %p62 = scmp.ne.s32.totalorder %s45, %s61
      %p63 = scmp.eq.s32.totalorder %s23, 0
      %p64 = por %p62, %p63
      %s65 = sadd.s32 %s24, %s25
      %s66 = sadd.s32 %s36, %s32
      %s67 = ssub.s32 %s65, %s66
      %p68 = scmp.eq.s32.totalorder %s67, 0
      %s70 = sadd.s32 %s69, 1
      %s71 = scalar_select %p68, %s69, %s70
      %p74 = pneg %p68
      %p75 = scmp.eq.s32.totalorder %s17, 1
      %p76 = por %p74, %p75
      %p77 = scmp.ne.s32.totalorder %s69, %s72
      %p78 = scmp.eq.s32.totalorder %s17, 0
      %p79 = por %p77, %p78
      %p80 = scmp.ne.s32.totalorder %s69, %s72
      %p81 = scmp.eq.s32.totalorder %s22, 1
      %p82 = por %p80, %p81
      %p83 = scmp.ne.s32.totalorder %s72, %s73
      %p84 = scmp.eq.s32.totalorder %s22, 0
      %p85 = por %p83, %p84
      %p86 = scmp.ne.s32.totalorder %s72, %s73
      %p87 = scmp.eq.s32.totalorder %s23, 1
      %p88 = por %p86, %p87
      %p90 = scmp.ne.s32.totalorder %s73, %s89
      %p91 = scmp.eq.s32.totalorder %s23, 0
      %p92 = por %p90, %p91
      %s93 = ssub.s32 %s24, %s36
      %p94 = scmp.eq.s32.totalorder %s93, 0
      %s96 = sadd.s32 %s95, 1
      %s97 = scalar_select %p94, %s95, %s96
      %p100 = pneg %p94
      %p101 = scmp.eq.s32.totalorder %s17, 1
      %p102 = por %p100, %p101
      %p103 = scmp.ne.s32.totalorder %s95, %s98
      %p104 = scmp.eq.s32.totalorder %s17, 0
      %p105 = por %p103, %p104
      %p106 = scmp.ne.s32.totalorder %s95, %s98
      %p107 = scmp.eq.s32.totalorder %s22, 1
      %p108 = por %p106, %p107
      %p109 = scmp.ne.s32.totalorder %s98, %s99
      %p110 = scmp.eq.s32.totalorder %s22, 0
      %p111 = por %p109, %p110
      %p112 = scmp.ne.s32.totalorder %s98, %s99
      %p113 = scmp.eq.s32.totalorder %s23, 1
      %p114 = por %p112, %p113
      %p116 = scmp.ne.s32.totalorder %s99, %s115
      %p117 = scmp.eq.s32.totalorder %s23, 0
      %p118 = por %p116, %p117
      %p119 = scmp.le.s32.totalorder 1, %s17
      %p120 = scmp.lt.s32.totalorder %s17, 3
      %p121 = pnand %p119, %p120
      %p122 = pneg %p121
      // Predicated region
      $region9: #{tpu_custom_call.1} parent=5 // pred_check
        _
      $region10: #{tpu_custom_call.1} parent=5 // pred_check_branch
        %124 = sbr.rel (%p121) target = $region12
      $region11: #{tpu_custom_call.1} parent=5 // pred_region
        %s125 = ssub.s32 %s17, 1
      $region12: #{tpu_custom_call.1} parent=5 // pred_fallthru
        _
      %p126 = scmp.lt.s32.totalorder %s17, 2
      // Predicated region
      $region13: #{tpu_custom_call.1} parent=5 // pred_check
        %p127 = pneg %p126
      $region14: #{tpu_custom_call.1} parent=5 // pred_check_branch
        %129 = sbr.rel (%p127) target = $region16
      $region15: #{tpu_custom_call.1} parent=5 // pred_region
        // Predicated region
        $region17: #{tpu_custom_call.1} parent=15 // pred_check
          %p130 = pneg %p51
        $region18: #{tpu_custom_call.1} parent=15 // pred_check_branch
          %132 = sbr.rel (%p130) target = $region20
        $region19: #{tpu_custom_call.1} parent=15 // pred_region
          %s133 = sand.u32 %s41, 1
          %s134 = scalar_lea.sflag [#allocation3], %s133
          %s135 = sand.u32 %s41, 1
          %s136 = smul.addr %s135, 32
          %s137 = scalar_lea.vmem [#allocation2], %s136
          %s138 = sadd.s32 %s24, %s25
          %s139 = smul.u32 4, %s138
          %s141 = ssub.s32 512, 512
          %142 = vsyncadd %s134, %s141
          %s143 = smul.addr %s139, 128
          %s144 = scalar_lea.hbm %s0, %s143
          %s145 = sshll.u32 %s137, 4
          %s146 = int_to_ptr.vmem [resolvable:$true] %s145
          %151 = dma.hbm_to_vmem [thread:$0]  %s144, 512, %s146, %s134, 128, 128, 8
        $region20: #{tpu_custom_call.1} parent=15 // pred_fallthru
          _
        // Predicated region
        $region21: #{tpu_custom_call.1} parent=15 // pred_check
          %p152 = pneg %p79
        $region22: #{tpu_custom_call.1} parent=15 // pred_check_branch
          %154 = sbr.rel (%p152) target = $region24
        $region23: #{tpu_custom_call.1} parent=15 // pred_region
          %s155 = sand.u32 %s69, 1
          %s156 = scalar_lea.sflag [#allocation6], %s155
          %s157 = sand.u32 %s69, 1
          %s158 = smul.addr %s157, 32
          %s159 = scalar_lea.vmem [#allocation5], %s158
          %s160 = sadd.s32 %s24, %s25
          %s161 = smul.u32 4, %s160
          %s163 = ssub.s32 512, 512
          %164 = vsyncadd %s156, %s163
          %s165 = smul.addr %s161, 128
          %s166 = scalar_lea.hbm %s1, %s165
          %s167 = sshll.u32 %s159, 4
          %s168 = int_to_ptr.vmem [resolvable:$true] %s167
          %173 = dma.hbm_to_vmem [thread:$0]  %s166, 512, %s168, %s156, 128, 128, 8
        $region24: #{tpu_custom_call.1} parent=15 // pred_fallthru
          _
      $region16: #{tpu_custom_call.1} parent=5 // pred_fallthru
        _
      %p174 = scmp.le.s32.totalorder 1, %s17
      %p175 = scmp.lt.s32.totalorder %s17, 3
      %p176 = pnand %p174, %p175
      %p177 = pneg %p176
      // Predicated region
      $region25: #{tpu_custom_call.1} parent=5 // pred_check
        _
      $region26: #{tpu_custom_call.1} parent=5 // pred_check_branch
        %179 = sbr.rel (%p176) target = $region28
      $region27: #{tpu_custom_call.1} parent=5 // pred_region
        %s180 = ssub.s32 %s17, 1
        %s181 = sand.u32 %s44, 1
        %s182 = scalar_lea.sflag [#allocation3], %s181
        %s183 = sand.u32 %s44, 1
        %s184 = smul.addr %s183, 32
        %s185 = scalar_lea.vmem [#allocation2], %s184
        // Predicated region
        $region29: #{tpu_custom_call.1} parent=27 // pred_check
          %p186 = pneg %p57
        $region30: #{tpu_custom_call.1} parent=27 // pred_check_branch
          %188 = sbr.rel (%p186) target = $region32
        $region31: #{tpu_custom_call.1} parent=27 // pred_region
          %189 = dma.done %s182, 512
        $region32: #{tpu_custom_call.1} parent=27 // pred_fallthru
          _
        %s190 = sand.u32 %s72, 1
        %s191 = scalar_lea.sflag [#allocation6], %s190
        %s192 = sand.u32 %s72, 1
        %s193 = smul.addr %s192, 32
        %s194 = scalar_lea.vmem [#allocation5], %s193
        // Predicated region
        $region33: #{tpu_custom_call.1} parent=27 // pred_check
          %p195 = pneg %p85
        $region34: #{tpu_custom_call.1} parent=27 // pred_check_branch
          %197 = sbr.rel (%p195) target = $region36
        $region35: #{tpu_custom_call.1} parent=27 // pred_region
          %198 = dma.done %s191, 512
        $region36: #{tpu_custom_call.1} parent=27 // pred_fallthru
          _
        %s199 = sand.u32 %s44, 1
        %s200 = scalar_lea.sflag [#allocation3], %s199
        %s201 = sand.u32 %s44, 1
        %s202 = smul.addr %s201, 32
        %s203 = scalar_lea.vmem [#allocation2], %s202
        %p204 = pneg %p57
        %p205 = pneg %p54
        %s206 = sand.u32 %s72, 1
        %s207 = scalar_lea.sflag [#allocation6], %s206
        %s208 = sand.u32 %s72, 1
        %s209 = smul.addr %s208, 32
        %s210 = scalar_lea.vmem [#allocation5], %s209
        %p211 = pneg %p85
        %p212 = pneg %p82
        %p213 = pneg %p111
        %p214 = pneg %p108
        %s215 = sand.u32 %s98, 1
        %s216 = scalar_lea.sflag [#allocation4], %s215
        %s217 = sand.u32 %s98, 1
        %s218 = smul.addr %s217, 32
        %s219 = scalar_lea.vmem [#allocation7], %s218
        %s220 = sadd.s32 %s26, %s27
        %s221 = smul.u32 4, %s220
        %s222 = sadd.s32 %s26, %s27
        %s223 = smul.u32 4, %s222
        %p224 = scmp.eq.s32.totalorder %s27, 0
        // Predicated region
        $region37: #{tpu_custom_call.1} parent=27 // pred_check
          %p225 = pneg %p224
        $region38: #{tpu_custom_call.1} parent=27 // pred_check_branch
          %227 = sbr.rel (%p225) target = $region40
        $region39: #{tpu_custom_call.1} parent=27 // pred_region
          %228 = vst [vmem:[%s219] sm:$0xff] 0.0
          %229 = vst [vmem:[%s219 + $0x8] sm:$0xff] 0.0
          %230 = vst [vmem:[%s219 + $0x10] sm:$0xff] 0.0
          %231 = vst [vmem:[%s219 + $0x18] sm:$0xff] 0.0
        $region40: #{tpu_custom_call.1} parent=27 // pred_fallthru
          _
        %v232 = vld [vmem:[%s185] sm:$0xff]
        %v233 = vld [vmem:[%s185 + $0x8] sm:$0xff]
        %v234 = vld [vmem:[%s185 + $0x10] sm:$0xff]
        %v235 = vld [vmem:[%s185 + $0x18] sm:$0xff]
        %v236 = vld [vmem:[%s194] sm:$0xff]
        %v237 = vld [vmem:[%s194 + $0x8] sm:$0xff]
        %v238 = vld [vmem:[%s194 + $0x10] sm:$0xff]
        %v239 = vld [vmem:[%s194 + $0x18] sm:$0xff]
        %v240 = vand.u32 2147483647, %v232
        %v241 = vand.u32 2147483647, %v233
        %v242 = vand.u32 2147483647, %v234
        %v243 = vand.u32 2147483647, %v235
        %v244 = vsub.f32 0.0, %v240
        %v245 = vsub.f32 0.0, %v241
        %v246 = vsub.f32 0.0, %v242
        %v247 = vsub.f32 0.0, %v243
        %v248 = vmul.f32 %v244, 1.442695
        %v249 = vpow.pop %v248
        %v250 = vmul.f32 %v245, 1.442695
        %v251 = vpow.pop %v250
        %v252 = vmul.f32 %v246, 1.442695
        %v253 = vpow.pop %v252
        %v254 = vmul.f32 %v247, 1.442695
        %v255 = vpow.pop %v254
        %vm256 = vcmp.ge.f32.partialorder %v232, 0.0
        %vm257 = vcmp.ge.f32.partialorder %v233, 0.0
        %vm258 = vcmp.ge.f32.partialorder %v234, 0.0
        %vm259 = vcmp.ge.f32.partialorder %v235, 0.0
        %v260 = vsel %vm256, 1.0, %v249
        %v261 = vsel %vm257, 1.0, %v251
        %v262 = vsel %vm258, 1.0, %v253
        %v263 = vsel %vm259, 1.0, %v255
        %v264 = vadd.f32 %v249, 1.0
        %v265 = vadd.f32 %v251, 1.0
        %v266 = vadd.f32 %v253, 1.0
        %v267 = vadd.f32 %v255, 1.0
        %v268 = vrcp.pop %v264
        %v269 = vmul.f32 %v260, %v268
        %v270 = vrcp.pop %v265
        %v271 = vmul.f32 %v261, %v270
        %v272 = vrcp.pop %v266
        %v273 = vmul.f32 %v262, %v272
        %v274 = vrcp.pop %v267
        %v275 = vmul.f32 %v263, %v274
        %v276 = vmax.f32 %v232, 0.0
        %v277 = vmax.f32 %v233, 0.0
        %v278 = vmax.f32 %v234, 0.0
        %v279 = vmax.f32 %v235, 0.0
        %v280 = vmul.f32 %v236, %v232
        %v281 = vmul.f32 %v237, %v233
        %v282 = vmul.f32 %v238, %v234
        %v283 = vmul.f32 %v239, %v235
        %v284 = vsub.f32 %v276, %v280
        %v285 = vsub.f32 %v277, %v281
        %v286 = vsub.f32 %v278, %v282
        %v287 = vsub.f32 %v279, %v283
        %v288 = vadd.f32 %v249, 1.0
        %v289 = vlog2.pop %v288
        %v290 = vmul.f32 %v289, 0.6931472
        %v291 = vmul.f32 -0.5, %v249
        %v292 = vadd.f32 %v291, 1.0
        %v293 = vmul.f32 %v292, %v249
        %v294 = vand.u32 2147483647, %v249
        %vm295 = vcmp.lt.f32.partialorder %v294, 0.0004427343
        %v296 = vsel %vm295, %v293, %v290
        %v297 = vadd.f32 %v251, 1.0
        %v298 = vlog2.pop %v297
        %v299 = vmul.f32 %v298, 0.6931472
        %v300 = vmul.f32 -0.5, %v251
        %v301 = vadd.f32 %v300, 1.0
        %v302 = vmul.f32 %v301, %v251
        %v303 = vand.u32 2147483647, %v251
        %vm304 = vcmp.lt.f32.partialorder %v303, 0.0004427343
        %v305 = vsel %vm304, %v302, %v299
        %v306 = vadd.f32 %v253, 1.0
        %v307 = vlog2.pop %v306
        %v308 = vmul.f32 %v307, 0.6931472
        %v309 = vmul.f32 -0.5, %v253
        %v310 = vadd.f32 %v309, 1.0
        %v311 = vmul.f32 %v310, %v253
        %v312 = vand.u32 2147483647, %v253
        %vm313 = vcmp.lt.f32.partialorder %v312, 0.0004427343
        %v314 = vsel %vm313, %v311, %v308
        %v315 = vadd.f32 %v255, 1.0
        %v316 = vlog2.pop %v315
        %v317 = vmul.f32 %v316, 0.6931472
        %v318 = vmul.f32 -0.5, %v255
        %v319 = vadd.f32 %v318, 1.0
        %v320 = vmul.f32 %v319, %v255
        %v321 = vand.u32 2147483647, %v255
        %vm322 = vcmp.lt.f32.partialorder %v321, 0.0004427343
        %v323 = vsel %vm322, %v320, %v317
        %v324 = vadd.f32 %v284, %v296
        %v325 = vadd.f32 %v285, %v305
        %v326 = vadd.f32 %v286, %v314
        %v327 = vadd.f32 %v287, %v323
        %v328 = vld [vmem:[%s219] sm:$0xff]
        %v329 = vmul.f32 %v269, %v236
        %v330 = vmul.f32 %v271, %v237
        %v331 = vmul.f32 %v273, %v238
        %v332 = vmul.f32 %v275, %v239
        %v333 = vadd.f32 %v329, %v330
        %v334 = vadd.f32 %v333, %v331
        %v335 = vadd.f32 %v334, %v332
        %v336 = vadd.f32 %v328, %v335
        %337 = vst [vmem:[%s219] sm:$0xff] %v336
        %s338 = scalar_lea.vmem %s219, 8 [#allocation7]
        %v339 = vld [vmem:[%s338] sm:$0xff]
        %v340 = vadd.f32 %v269, %v271
        %v341 = vadd.f32 %v340, %v273
        %v342 = vadd.f32 %v341, %v275
        %v343 = vadd.f32 %v339, %v342
        %344 = vst [vmem:[%s338] sm:$0xff] %v343
        %s345 = scalar_lea.vmem %s219, 16 [#allocation7]
        %v346 = vld [vmem:[%s345] sm:$0xff]
        %v347 = vadd.f32 %v236, %v237
        %v348 = vadd.f32 %v347, %v238
        %v349 = vadd.f32 %v348, %v239
        %v350 = vadd.f32 %v346, %v349
        %351 = vst [vmem:[%s345] sm:$0xff] %v350
        %s352 = scalar_lea.vmem %s219, 24 [#allocation7]
        %v353 = vld [vmem:[%s352] sm:$0xff]
        %v354 = vadd.f32 %v324, %v325
        %v355 = vadd.f32 %v354, %v326
        %v356 = vadd.f32 %v355, %v327
        %v357 = vadd.f32 %v353, %v356
        %358 = vst [vmem:[%s352] sm:$0xff] %v357
        %s359 = sand.u32 %s98, 1
        %s360 = scalar_lea.sflag [#allocation4], %s359
        %s361 = sand.u32 %s98, 1
        %s362 = smul.addr %s361, 32
        %s363 = scalar_lea.vmem [#allocation7], %s362
        // Predicated region
        $region41: #{tpu_custom_call.1} parent=27 // pred_check
          %p364 = pneg %p108
        $region42: #{tpu_custom_call.1} parent=27 // pred_check_branch
          %366 = sbr.rel (%p364) target = $region44
        $region43: #{tpu_custom_call.1} parent=27 // pred_region
          %s368 = ssub.s32 512, 512
          %369 = vsyncadd %s360, %s368
          %s370 = smul.addr %s26, 4
          %s371 = smul.addr %s370, 128
          %s372 = scalar_lea.hbm %s2, %s371
          %s373 = sshll.u32 %s363, 4
          %s374 = int_to_ptr.vmem [resolvable:$true] %s373
          %379 = dma.vmem_to_hbm [thread:$0]  %s374, 512, %s372, %s360, 128, 128, 8
        $region44: #{tpu_custom_call.1} parent=27 // pred_fallthru
          _
      $region28: #{tpu_custom_call.1} parent=5 // pred_fallthru
        _
      %p380 = scmp.le.s32.totalorder 2, %s17
      // Predicated region
      $region45: #{tpu_custom_call.1} parent=5 // pred_check
        %p381 = pneg %p380
      $region46: #{tpu_custom_call.1} parent=5 // pred_check_branch
        %383 = sbr.rel (%p381) target = $region48
      $region47: #{tpu_custom_call.1} parent=5 // pred_region
        %s384 = ssub.s32 %s17, 2
        // Predicated region
        $region49: #{tpu_custom_call.1} parent=47 // pred_check
          %p385 = pneg %p114
        $region50: #{tpu_custom_call.1} parent=47 // pred_check_branch
          %387 = sbr.rel (%p385) target = $region52
        $region51: #{tpu_custom_call.1} parent=47 // pred_region
          %s388 = sand.u32 %s99, 1
          %s389 = scalar_lea.sflag [#allocation4], %s388
          %s390 = sand.u32 %s99, 1
          %s391 = smul.addr %s390, 32
          %s392 = scalar_lea.vmem [#allocation7], %s391
          %393 = dma.done %s389, 512
        $region52: #{tpu_custom_call.1} parent=47 // pred_fallthru
          _
      $region48: #{tpu_custom_call.1} parent=5 // pred_fallthru
        _
    $region6: #{tpu_custom_call.1} parent=1 // loop_footer
      %s21 = sadd.s32 1, %s17
    $region7: #{tpu_custom_call.1} parent=1 // loop_footer_branch
      %16 = sbr.rel target = $region3
    $region8: #{tpu_custom_call.1} parent=1 // loop_exit
      _
    %394 = vsyncpa [#allocation3], 1
    %s395 = scalar_lea.sflag [#allocation3], 1
    %396 = vsyncpa %s395, 1
    %397 = vsyncpa [#allocation6], 1
    %s398 = scalar_lea.sflag [#allocation6], 1
    %399 = vsyncpa %s398, 1
    %400 = vsyncpa [#allocation4], 1
    %s401 = scalar_lea.sflag [#allocation4], 1
    %402 = vsyncpa %s401, 1

</llo_original>
